<compile_context>
chip_gen: v5e
topology: v5e:2x2
jax: 0.10.0
libtpu: 0.0.40
codegen_flags: <defaults>
</compile_context>

<pallas_src>
import functools

import jax
import jax.numpy as jnp
from jax.experimental import pallas as pl
from jax.experimental.pallas import tpu as pltpu


def _round_up(v, m):
    return ((v + m - 1) // m) * m


def _apply_activation(name, h, lrelu_slope):
    if name == "relu":
        return jnp.maximum(h, 0.0)
    if name == "lrelu":
        return jnp.where(h > 0.0, h, lrelu_slope * h)
    if name == "tanh":
        return jnp.tanh(h)
    if name == "sigmoid":
        # Single EUP push (tanh) instead of exp + reciprocal; same function.
        return 0.5 * jnp.tanh(0.5 * h) + 0.5
    raise ValueError(f"unknown activation {name}")


def _shared_dae_kernel(x_ref, wsq_ref, vec_ref, out_ref, *,
                       n_hidden, hid, activations, lrelu_slope):
    """One batch tile: x_ref [1, TB] -> out_ref [1, TB] (batch on lanes).

    vec_ref (f32) columns: [w1 | b1 | b_2 .. b_{n_hidden} | w_out | b_out(row 0)]
    wsq_ref (bf16)       : [n_sq, hid, hid] stack of W^T (W @ h form) hidden weights.
    """
    xb = x_ref[...]                                      # [1, TB] f32

    # Layer 1 (K == 1): VPU broadcast multiply-add, no MXU, full f32.
    w1 = vec_ref[:, 0:1]                                 # [H, 1]
    b1 = vec_ref[:, 1:2]                                 # [H, 1]
    h = w1 * xb + b1                                     # [H, TB]
    h = _apply_activation(activations[0], h, lrelu_slope)

    # Hidden layers 2..n: bf16 MXU matmuls with f32 accumulate, batch on lanes.
    for li in range(1, n_hidden):
        w = wsq_ref[li - 1]                              # [H, H] bf16
        b = vec_ref[:, 1 + li:2 + li]                    # [H, 1] f32
        h = jnp.dot(w, h.astype(jnp.bfloat16),
                    preferred_element_type=jnp.float32) + b
        h = _apply_activation(activations[li], h, lrelu_slope)

    # Output layer (N == 1): VPU multiply + XLU sublane reduce, no MXU, f32.
    wo = vec_ref[:, 1 + n_hidden:2 + n_hidden]           # [H, 1]
    bo = vec_ref[0:1, 2 + n_hidden:3 + n_hidden]         # [1, 1]
    out = jnp.sum(wo * h, axis=0, keepdims=True) + bo    # [1, TB]
    out_ref[...] = out.astype(out_ref.dtype)


def _tpu_tiling_defaults():
    """Generation-aware (batch-tile cap, scoped-VMEM limit)."""
    try:
        vmem_bytes = int(getattr(pltpu.get_tpu_info(), "vmem_capacity_bytes", 0))
    except Exception:  # no TPU info available -> conservative settings
        vmem_bytes = 0
    if vmem_bytes >= 100 * 1024 * 1024:
        # v5e / v6e: 128 MiB VMEM, single TensorCore -> fewer, fatter tiles.
        return 16384, 64 * 1024 * 1024
    # v7x (64 MiB per TC) or unknown -> conservative cap, 32 MiB scoped VMEM.
    return 8192, 32 * 1024 * 1024


def pack_shared_dae_params(params, activations):
    """Pack (W, b) pairs into two device slabs.  Call ONCE, reuse every forward.

    params: list of (W(in,out), b(out,)); last entry is the output layer.
    """
    n_hidden = len(activations)
    if len(params) != n_hidden + 1:
        raise ValueError("need one (W, b) per activation plus the output layer")
    units = [params[i][0].shape[1] for i in range(n_hidden)]
    hid = max(8, _round_up(max(units), 8))               # common padded hidden width
    f32 = jnp.float32

    def pad_col(v):                                      # (k,) / (k,1) -> (hid, 1)
        v = jnp.asarray(v, f32).reshape(-1, 1)
        return jnp.pad(v, ((0, hid - v.shape[0]), (0, 0)))

    # Square hidden weights, stored transposed as (out, in) for W @ h; bf16 for MXU.
    squares = []
    for i in range(1, n_hidden):
        w = jnp.asarray(params[i][0], f32).T             # (units[i], units[i-1])
        squares.append(jnp.pad(w, ((0, hid - w.shape[0]), (0, hid - w.shape[1]))))
    if not squares:                                      # keep pallas inputs non-empty
        squares.append(jnp.zeros((hid, hid), f32))
    wsq_packed = jnp.stack(squares, axis=0).astype(jnp.bfloat16)   # [n_sq, hid, hid]

    # Every vector (first-layer col, biases, output col, output bias) stays f32.
    cols = [pad_col(params[0][0]), pad_col(params[0][1])]          # w1, b1
    for i in range(1, n_hidden):
        cols.append(pad_col(params[i][1]))                          # b_i
    cols.append(pad_col(params[-1][0]))                             # w_out (units[-1], 1)
    cols.append(pad_col(params[-1][1]))                             # b_out at row 0
    vec_packed = jnp.concatenate(cols, axis=1)           # [hid, n_hidden + 3]

    return {
        "wsq": jax.device_put(wsq_packed),
        "vec": jax.device_put(vec_packed),
        "hid": hid,
        "n_hidden": n_hidden,
    }


def shared_dae_forward(x, packed, activations, lrelu_slope=0.1, block_b=None):
    """x: [B, 1]; packed: result of pack_shared_dae_params."""
    batch, input_dim = x.shape
    if input_dim != 1:
        raise ValueError("SharedDAE.forward only type-checks for input_dim == 1")
    n_hidden = packed["n_hidden"]
    hid = packed["hid"]
    if n_hidden != len(activations):
        raise ValueError("packed params do not match activations")
    wsq, vec = packed["wsq"], packed["vec"]
    f32 = jnp.float32

    # ---- generation-aware batch tiling -----------------------------------------
    tb_cap, vmem_limit = _tpu_tiling_defaults()
    if block_b is not None:
        tb_cap = max(128, _round_up(block_b, 128))
    b128 = _round_up(batch, 128)
    tb = min(tb_cap, b128)
    # Guarantee >= 2 grid tiles whenever the batch allows it, so v7x's second
    # TensorCore gets work (harmless ~0.35us extra step on single-TC v5e/v6e).
    if b128 >= 256:
        tb = min(tb, max(128, (b128 // 2) // 128 * 128))
    b_pad = _round_up(batch, tb)

    x_row = jnp.pad(jnp.asarray(x, f32).reshape(1, batch),
                    ((0, 0), (0, b_pad - batch)))

    kernel = functools.partial(
        _shared_dae_kernel,
        n_hidden=n_hidden, hid=hid,
        activations=tuple(activations), lrelu_slope=lrelu_slope,
    )

    n_trans = sum(1 for a in activations if a in ("tanh", "sigmoid"))
    cost = pl.CostEstimate(
        flops=int(2 * max(n_hidden - 1, 0) * hid * hid * b_pad + 4 * hid * b_pad),
        transcendentals=int(n_trans * hid * b_pad),
        bytes_accessed=int(8 * b_pad
                           + wsq.size * wsq.dtype.itemsize
                           + vec.size * vec.dtype.itemsize),
    )

    out_row = pl.pallas_call(
        kernel,
        out_shape=jax.ShapeDtypeStruct((1, b_pad), f32),
        grid_spec=pltpu.PrefetchScalarGridSpec(
            num_scalar_prefetch=0,
            grid=(b_pad // tb,),
            in_specs=[
                pl.BlockSpec((1, tb), lambda i: (0, i)),               # x batch tile
                pl.BlockSpec(wsq.shape, lambda i: (0, 0, 0)),          # weights resident
                pl.BlockSpec(vec.shape, lambda i: (0, 0)),             # vectors resident
            ],
            out_specs=pl.BlockSpec((1, tb), lambda i: (0, i)),         # lane-dense output
        ),
        compiler_params=pltpu.CompilerParams(
            dimension_semantics=("parallel",),    # shard batch tiles across TCs (v7x)
            vmem_limit_bytes=vmem_limit,          # generation-aware scoped VMEM
        ),
        cost_estimate=cost,
    )(x_row, wsq, vec)

    return out_row[:, :batch].reshape(batch, 1)


def _init_params(key, input_dim, layer_units):
    """Deterministic init matching nn.Linear shapes (stored as (in, out))."""
    params = []
    dims = [input_dim] + list(layer_units)
    n_layers = len(layer_units)
    keys = jax.random.split(key, 2 * (n_layers + 1))
    ki = 0
    for i in range(n_layers):
        fan_in = dims[i]
        bound = 1.0 / (fan_in ** 0.5)
        w = jax.random.uniform(keys[ki], (dims[i], dims[i + 1]),
                               minval=-bound, maxval=bound, dtype=jnp.float32)
        b = jax.random.uniform(keys[ki + 1], (dims[i + 1],),
                               minval=-bound, maxval=bound, dtype=jnp.float32)
        params.append((w, b))
        ki += 2
    # output_layer: Linear(layer_units[-1] * input_dim, input_dim)
    fan_in = layer_units[-1] * input_dim
    bound = 1.0 / (fan_in ** 0.5)
    wo = jax.random.uniform(keys[ki], (fan_in, input_dim),
                            minval=-bound, maxval=bound, dtype=jnp.float32)
    bo = jax.random.uniform(keys[ki + 1], (input_dim,),
                            minval=-bound, maxval=bound, dtype=jnp.float32)
    params.append((wo, bo))
    return params


def _reference_forward(x, params, activations, lrelu_slope=0.1):
    h = x
    for (w, b), act in zip(params[:-1], activations):
        h = jnp.dot(h, w, precision=jax.lax.Precision.HIGHEST) + b
        if act == "relu":
            h = jnp.maximum(h, 0.0)
        elif act == "lrelu":
            h = jnp.where(h > 0.0, h, lrelu_slope * h)
        elif act == "tanh":
            h = jnp.tanh(h)
        elif act == "sigmoid":
            h = jax.nn.sigmoid(h)
        else:
            raise ValueError(act)
    wo, bo = params[-1]
    return jnp.dot(h, wo, precision=jax.lax.Precision.HIGHEST) + bo


if __name__ == "__main__":
    # Module config (forward as-written forces input_dim == feat_num == 1).
    layer_units = [32, 64, 32]
    activations = ["relu", "tanh", "sigmoid"]
    input_dim = 1

    root = jax.random.PRNGKey(0)
    kx, kp = jax.random.split(root)
    params = _init_params(kp, input_dim, layer_units)
    packed = pack_shared_dae_params(params, activations)   # pack ONCE, reuse per call

    # (8): single tile. (300): multi-tile via the >=2-tile clamp + padding.
    # (2048): larger tiles, 2-way grid. (300, block_b=128): explicit small tile.
    for batch, block_b in ((8, None), (300, None), (2048, None), (300, 128)):
        x = jax.random.normal(jax.random.fold_in(kx, batch),
                              (batch, input_dim), dtype=jnp.float32)
        out = jax.block_until_ready(
            shared_dae_forward(x, packed, activations, block_b=block_b))
        ref = _reference_forward(x, params, activations)
        assert out.shape == (batch, input_dim)
        # bf16 MXU operands (f32 accumulate) vs f32 reference -> loosened tolerance.
        assert jnp.allclose(out, ref, atol=2e-2, rtol=2e-2), \
            f"mismatch vs JAX reference at batch={batch}, block_b={block_b}"

    print("KERNEL_OK")
</pallas_src>

<mosaic_0001>
module attributes {stable_mosaic.version = 11 : i64} {
  func.func @_shared_dae_kernel(%arg0: i32, %arg1: memref<1x128xf32, #tpu.memory_space<vmem>>, %arg2: memref<2x64x64xbf16, #tpu.memory_space<vmem>>, %arg3: memref<64x6xf32, #tpu.memory_space<vmem>>, %arg4: memref<1x128xf32, #tpu.memory_space<vmem>>) attributes {dimension_semantics = [#tpu.dimension_semantics<parallel>], iteration_bounds = array<i64: 1>, scalar_prefetch = 0 : i64, scratch_operands = 0 : i64, tpu.core_type = #tpu.core_type<tc>, window_params = [{transform_indices = @transform_0, window_bounds = array<i64: 1, 128>}, {pipeline_mode = #tpu.pipeline_mode<synchronous>, transform_indices = @transform_1, window_bounds = array<i64: 2, 64, 64>}, {pipeline_mode = #tpu.pipeline_mode<synchronous>, transform_indices = @transform_2, window_bounds = array<i64: 64, 6>}, {transform_indices = @transform_3, window_bounds = array<i64: 1, 128>}]} {
    %c0 = arith.constant 0 : index
    %c0_0 = arith.constant 0 : index
    %0 = vector.load %arg1[%c0, %c0_0] : memref<1x128xf32, #tpu.memory_space<vmem>>, vector<1x128xf32>
    %c0_1 = arith.constant 0 : index
    %c0_2 = arith.constant 0 : index
    %1 = vector.load %arg3[%c0_1, %c0_2] : memref<64x6xf32, #tpu.memory_space<vmem>>, vector<64x1xf32>
    %c0_3 = arith.constant 0 : index
    %c1 = arith.constant 1 : index
    %2 = vector.load %arg3[%c0_3, %c1] : memref<64x6xf32, #tpu.memory_space<vmem>>, vector<64x1xf32>
    %3 = vector.broadcast %1 : vector<64x1xf32> to vector<64x128xf32>
    %4 = vector.broadcast %0 : vector<1x128xf32> to vector<64x128xf32>
    %5 = arith.mulf %3, %4 : vector<64x128xf32>
    %6 = vector.broadcast %2 : vector<64x1xf32> to vector<64x128xf32>
    %7 = arith.addf %5, %6 : vector<64x128xf32>
    %cst = arith.constant 0.000000e+00 : f32
    %8 = vector.broadcast %cst : f32 to vector<64x128xf32>
    %9 = arith.maximumf %7, %8 : vector<64x128xf32>
    %c0_4 = arith.constant 0 : index
    %c0_5 = arith.constant 0 : index
    %c0_6 = arith.constant 0 : index
    %10 = vector.load %arg2[%c0_4, %c0_5, %c0_6] : memref<2x64x64xbf16, #tpu.memory_space<vmem>>, vector<1x64x64xbf16>
    %11 = vector.shape_cast %10 : vector<1x64x64xbf16> to vector<64x64xbf16>
    %c0_7 = arith.constant 0 : index
    %c2 = arith.constant 2 : index
    %12 = vector.load %arg3[%c0_7, %c2] : memref<64x6xf32, #tpu.memory_space<vmem>>, vector<64x1xf32>
    %13 = arith.truncf %9 : vector<64x128xf32> to vector<64x128xbf16>
    %cst_8 = arith.constant dense<0.000000e+00> : vector<64x128xf32>
    %14 = tpu.matmul %11, %13, %cst_8 {dimension_numbers = #tpu.dot_dimension_numbers<[1], [0], [0], [1], [0, 0, 1, 1], [], []>} : vector<64x64xbf16>, vector<64x128xbf16>, vector<64x128xf32> -> vector<64x128xf32>
    %15 = vector.broadcast %12 : vector<64x1xf32> to vector<64x128xf32>
    %16 = arith.addf %14, %15 : vector<64x128xf32>
    %17 = math.tanh %16 : vector<64x128xf32>
    %c1_9 = arith.constant 1 : index
    %c0_10 = arith.constant 0 : index
    %c0_11 = arith.constant 0 : index
    %18 = vector.load %arg2[%c1_9, %c0_10, %c0_11] : memref<2x64x64xbf16, #tpu.memory_space<vmem>>, vector<1x64x64xbf16>
    %19 = vector.shape_cast %18 : vector<1x64x64xbf16> to vector<64x64xbf16>
    %c0_12 = arith.constant 0 : index
    %c3 = arith.constant 3 : index
    %20 = vector.load %arg3[%c0_12, %c3] : memref<64x6xf32, #tpu.memory_space<vmem>>, vector<64x1xf32>
    %21 = arith.truncf %17 : vector<64x128xf32> to vector<64x128xbf16>
    %cst_13 = arith.constant dense<0.000000e+00> : vector<64x128xf32>
    %22 = tpu.matmul %19, %21, %cst_13 {dimension_numbers = #tpu.dot_dimension_numbers<[1], [0], [0], [1], [0, 0, 1, 1], [], []>} : vector<64x64xbf16>, vector<64x128xbf16>, vector<64x128xf32> -> vector<64x128xf32>
    %23 = vector.broadcast %20 : vector<64x1xf32> to vector<64x128xf32>
    %24 = arith.addf %22, %23 : vector<64x128xf32>
    %cst_14 = arith.constant 5.000000e-01 : f32
    %25 = vector.broadcast %cst_14 : f32 to vector<64x128xf32>
    %26 = arith.mulf %25, %24 : vector<64x128xf32>
    %27 = math.tanh %26 : vector<64x128xf32>
    %cst_15 = arith.constant 5.000000e-01 : f32
    %28 = vector.broadcast %cst_15 : f32 to vector<64x128xf32>
    %29 = arith.mulf %28, %27 : vector<64x128xf32>
    %cst_16 = arith.constant 5.000000e-01 : f32
    %30 = vector.broadcast %cst_16 : f32 to vector<64x128xf32>
    %31 = arith.addf %29, %30 : vector<64x128xf32>
    %c0_17 = arith.constant 0 : index
    %c4 = arith.constant 4 : index
    %32 = vector.load %arg3[%c0_17, %c4] : memref<64x6xf32, #tpu.memory_space<vmem>>, vector<64x1xf32>
    %c0_18 = arith.constant 0 : index
    %c5 = arith.constant 5 : index
    %33 = vector.load %arg3[%c0_18, %c5] : memref<64x6xf32, #tpu.memory_space<vmem>>, vector<1x1xf32>
    %34 = vector.broadcast %32 : vector<64x1xf32> to vector<64x128xf32>
    %35 = arith.mulf %34, %31 : vector<64x128xf32>
    %cst_19 = arith.constant dense<0.000000e+00> : vector<128xf32>
    %36 = vector.multi_reduction <add>, %35, %cst_19 [0] : vector<64x128xf32> to vector<128xf32>
    %37 = vector.shape_cast %36 : vector<128xf32> to vector<1x128xf32>
    %38 = vector.broadcast %33 : vector<1x1xf32> to vector<1x128xf32>
    %39 = arith.addf %37, %38 : vector<1x128xf32>
    %c0_20 = arith.constant 0 : index
    %c0_21 = arith.constant 0 : index
    %40 = vector.load %arg4[%c0_20, %c0_21] : memref<1x128xf32, #tpu.memory_space<vmem>>, vector<1x128xf32>
    tpu.vector_store %arg4[%c0_20, %c0_21], %39 {strides = array<i32>} : memref<1x128xf32, #tpu.memory_space<vmem>>, vector<1x128xf32>,
    return
  }
  func.func @transform_0(%arg0: i32) -> (i32, i32) {
    %c0_i32 = arith.constant 0 : i32
    %c0_i32_0 = arith.constant 0 : i32
    return %c0_i32, %arg0 : i32, i32
  }
  func.func @transform_1(%arg0: i32) -> (i32, i32, i32) {
    %c0_i32 = arith.constant 0 : i32
    %c0_i32_0 = arith.constant 0 : i32
    %c0_i32_1 = arith.constant 0 : i32
    %c0_i32_2 = arith.constant 0 : i32
    return %c0_i32, %c0_i32_0, %c0_i32_1 : i32, i32, i32
  }
  func.func @transform_2(%arg0: i32) -> (i32, i32) {
    %c0_i32 = arith.constant 0 : i32
    %c0_i32_0 = arith.constant 0 : i32
    %c0_i32_1 = arith.constant 0 : i32
    return %c0_i32, %c0_i32_0 : i32, i32
  }
  func.func @transform_3(%arg0: i32) -> (i32, i32) {
    %c0_i32 = arith.constant 0 : i32
    %c0_i32_0 = arith.constant 0 : i32
    return %c0_i32, %arg0 : i32, i32
  }
}

</mosaic_0001>

<llo_original>
// kernel: tpu_custom_call.1
$region0: #{tpu_custom_call.1}
  #allocation0 [shape = 'u32[]', space=smem, size = 0x4, offset = 0x4, fixed_abs, tag = 'smem constant byte address 0x4 - core index']
  #allocation1 [shape = 'u32[72,128]{1,0:T(1,128)}', space=vmem, size = 0x9000, scoped, tag = 'internal scratch']
  %s0 = inlined_call_operand.vmem [shape: f32[1,128], index: 0, kind: input, shape index: {}]
  %s1 = inlined_call_operand.vmem [shape: bf16[2,64,64], index: 1, kind: input, shape index: {}]
  %s2 = inlined_call_operand.vmem [shape: f32[64,6], index: 2, kind: input, shape index: {}]
  %s3 = inlined_call_operand.hbm [shape: f32[1,128], index: 3, kind: output, shape index: {}]
  %s4 = sld [smem:[#allocation0]]
  $region22: #{tpu_custom_call.1} parent=0
    _
  %s6 = ssub.s32 1, %s4
  %s7 = scalar_select 0, %s6, %s4
  $region1: #{tpu_custom_call.1} parent=0
    #allocation2 [shape = 'u8[512]{0}', space=vmem, size = 0x400, scoped, tag = 'output window, operand 0, single buffered']
    #allocation3 [shape = 's32[1]{0}', space=sflag, size = 0x4, scoped, tag = 'scoped memory for tpu_custom_call.1']
    %8 = vsyncpa [#allocation3], 0
    // Predicated region
    $region2: #{tpu_custom_call.1} parent=1 // pred_check
      _
    $region3: #{tpu_custom_call.1} parent=1 // pred_check_branch
      %10 = sbr.rel (0) target = $region5
    $region4: #{tpu_custom_call.1} parent=1 // pred_region
      _
    $region5: #{tpu_custom_call.1} parent=1 // pred_fallthru
      _
    // Predicated region
    $region6: #{tpu_custom_call.1} parent=1 // pred_check
      _
    $region7: #{tpu_custom_call.1} parent=1 // pred_check_branch
      %12 = sbr.rel (0) target = $region9
    $region8: #{tpu_custom_call.1} parent=1 // pred_region
      _
    $region9: #{tpu_custom_call.1} parent=1 // pred_fallthru
      _
    // Predicated region
    $region10: #{tpu_custom_call.1} parent=1 // pred_check
      _
    $region11: #{tpu_custom_call.1} parent=1 // pred_check_branch
      %14 = sbr.rel (0) target = $region13
    $region12: #{tpu_custom_call.1} parent=1 // pred_region
      _
    $region13: #{tpu_custom_call.1} parent=1 // pred_fallthru
      _
    %v16 = vld [vmem:[%s0] sm:$0x1]
    %v17 = vld [vmem:[%s2] sm:$0xff]
    %v18 = vld [vmem:[%s2 + $0x8] sm:$0xff]
    %v19 = vld [vmem:[%s2 + $0x10] sm:$0xff]
    %v20 = vld [vmem:[%s2 + $0x18] sm:$0xff]
    %v21 = vld [vmem:[%s2 + $0x20] sm:$0xff]
    %v22 = vld [vmem:[%s2 + $0x28] sm:$0xff]
    %v23 = vld [vmem:[%s2 + $0x30] sm:$0xff]
    %v24 = vld [vmem:[%s2 + $0x38] sm:$0xff]
    %26 = vset.pattern.permute.xlu0 0
    %27 = vperm.xlu0 %26, %v17
    %v28 = vpop.permute.xlu0 %27
    %31 = vset.pattern.permute.xlu0 0
    %32 = vperm.xlu0 %31, %v18
    %v33 = vpop.permute.xlu0 %32
    %36 = vset.pattern.permute.xlu0 0
    %37 = vperm.xlu0 %36, %v19
    %v38 = vpop.permute.xlu0 %37
    %41 = vset.pattern.permute.xlu0 0
    %42 = vperm.xlu0 %41, %v20
    %v43 = vpop.permute.xlu0 %42
    %46 = vset.pattern.permute.xlu0 0
    %47 = vperm.xlu0 %46, %v21
    %v48 = vpop.permute.xlu0 %47
    %51 = vset.pattern.permute.xlu0 0
    %52 = vperm.xlu0 %51, %v22
    %v53 = vpop.permute.xlu0 %52
    %56 = vset.pattern.permute.xlu0 0
    %57 = vperm.xlu0 %56, %v23
    %v58 = vpop.permute.xlu0 %57
    %61 = vset.pattern.permute.xlu0 0
    %62 = vperm.xlu0 %61, %v24
    %v63 = vpop.permute.xlu0 %62
    %v66 = vperm.slane %v16, 0
    %v68 = vmul.f32 %v28, %v66
    %v69 = vmul.f32 %v33, %v66
    %v70 = vmul.f32 %v38, %v66
    %v71 = vmul.f32 %v43, %v66
    %v72 = vmul.f32 %v48, %v66
    %v73 = vmul.f32 %v53, %v66
    %v74 = vmul.f32 %v58, %v66
    %v75 = vmul.f32 %v63, %v66
    %76 = vset.pattern.permute.xlu0 1
    %77 = vperm.xlu0 %76, %v17
    %v78 = vpop.permute.xlu0 %77
    %80 = vset.pattern.permute.xlu0 1
    %81 = vperm.xlu0 %80, %v18
    %v82 = vpop.permute.xlu0 %81
    %84 = vset.pattern.permute.xlu0 1
    %85 = vperm.xlu0 %84, %v19
    %v86 = vpop.permute.xlu0 %85
    %88 = vset.pattern.permute.xlu0 1
    %89 = vperm.xlu0 %88, %v20
    %v90 = vpop.permute.xlu0 %89
    %92 = vset.pattern.permute.xlu0 1
    %93 = vperm.xlu0 %92, %v21
    %v94 = vpop.permute.xlu0 %93
    %96 = vset.pattern.permute.xlu0 1
    %97 = vperm.xlu0 %96, %v22
    %v98 = vpop.permute.xlu0 %97
    %100 = vset.pattern.permute.xlu0 1
    %101 = vperm.xlu0 %100, %v23
    %v102 = vpop.permute.xlu0 %101
    %104 = vset.pattern.permute.xlu0 1
    %105 = vperm.xlu0 %104, %v24
    %v106 = vpop.permute.xlu0 %105
    %v108 = vadd.f32 %v68, %v78
    %v109 = vadd.f32 %v69, %v82
    %v110 = vadd.f32 %v70, %v86
    %v111 = vadd.f32 %v71, %v90
    %v112 = vadd.f32 %v72, %v94
    %v113 = vadd.f32 %v73, %v98
    %v114 = vadd.f32 %v74, %v102
    %v115 = vadd.f32 %v75, %v106
    %v116 = vmax.f32 %v108, 0.0
    %v117 = vmax.f32 %v109, 0.0
    %v118 = vmax.f32 %v110, 0.0
    %v119 = vmax.f32 %v111, 0.0
    %v120 = vmax.f32 %v112, 0.0
    %v121 = vmax.f32 %v113, 0.0
    %v122 = vmax.f32 %v114, 0.0
    %v123 = vmax.f32 %v115, 0.0
    %v124 = vld [vmem:[%s1] sm:$0xf]
    %v125 = vld [vmem:[%s1 + $0x4] sm:$0xf]
    %v126 = vld [vmem:[%s1 + $0x8] sm:$0xf]
    %v127 = vld [vmem:[%s1 + $0xc] sm:$0xf]
    %v128 = vld [vmem:[%s1 + $0x10] sm:$0xf]
    %v129 = vld [vmem:[%s1 + $0x14] sm:$0xf]
    %v130 = vld [vmem:[%s1 + $0x18] sm:$0xf]
    %v131 = vld [vmem:[%s1 + $0x1c] sm:$0xf]
    %v132 = vpack.c.bf16 %v117, %v116
    %v133 = vpack.c.bf16 %v119, %v118
    %v134 = vpack.c.bf16 %v121, %v120
    %v135 = vpack.c.bf16 %v123, %v122
    %136 = vset.pattern.permute.xlu0 2
    %137 = vperm.xlu0 %136, %v17
    %v138 = vpop.permute.xlu0 %137
    %140 = vset.pattern.permute.xlu0 2
    %141 = vperm.xlu0 %140, %v18
    %v142 = vpop.permute.xlu0 %141
    %144 = vset.pattern.permute.xlu0 2
    %145 = vperm.xlu0 %144, %v19
    %v146 = vpop.permute.xlu0 %145
    %148 = vset.pattern.permute.xlu0 2
    %149 = vperm.xlu0 %148, %v20
    %v150 = vpop.permute.xlu0 %149
    %152 = vset.pattern.permute.xlu0 2
    %153 = vperm.xlu0 %152, %v21
    %v154 = vpop.permute.xlu0 %153
    %156 = vset.pattern.permute.xlu0 2
    %157 = vperm.xlu0 %156, %v22
    %v158 = vpop.permute.xlu0 %157
    %160 = vset.pattern.permute.xlu0 2
    %161 = vperm.xlu0 %160, %v23
    %v162 = vpop.permute.xlu0 %161
    %164 = vset.pattern.permute.xlu0 2
    %165 = vperm.xlu0 %164, %v24
    %v166 = vpop.permute.xlu0 %165
    %v176 = vunpack.c.l.b16 %v124
    %v177 = vunpack.c.l.b16 %v125
    %v178 = vunpack.c.l.b16 %v126
    %v179 = vunpack.c.l.b16 %v127
    %v180 = vunpack.c.l.b16 %v128
    %v181 = vunpack.c.l.b16 %v129
    %v182 = vunpack.c.l.b16 %v130
    %v183 = vunpack.c.l.b16 %v131
    %v184 = vpack.c.b16 %v177, %v176
    %v185 = vpack.c.b16 %v179, %v178
    %v186 = vpack.c.b16 %v181, %v180
    %v187 = vpack.c.b16 %v183, %v182
    %vm188 = vcmask 523264
    %v190 = vsel %vm188, %v184, 0
    %v193 = vsel %vm188, %v185, 0
    %v196 = vsel %vm188, %v186, 0
    %v199 = vsel %vm188, %v187, 0
    %201 = vmatpush.bf16.msra.mxu0 0
    %202 = vmatpush.bf16.msra.mxu0 0
    %203 = vmatpush.bf16.msra.mxu0 0
    %204 = vmatpush.bf16.msra.mxu0 0
    %205 = vmatpush.bf16.msra.mxu0 %v135
    %206 = vmatpush.bf16.msra.mxu0 %v134
    %207 = vmatpush.bf16.msra.mxu0 %v133
    %208 = vmatpush.bf16.msra.mxu0 %v132
    %209 = vmatmul.bf16.gmra.mxu0 %v190
    %v210 = vpop.f32.mrf.mxu0
    %v211 = vadd.f32 %v138, %v210
    %v212 = vpop.f32.mrf.mxu0
    %v213 = vadd.f32 %v142, %v212
    %214 = vmatmul.bf16.gmra.mxu0 %v193
    %v215 = vpop.f32.mrf.mxu0
    %v216 = vadd.f32 %v146, %v215
    %v217 = vpop.f32.mrf.mxu0
    %v218 = vadd.f32 %v150, %v217
    %219 = vmatmul.bf16.gmra.mxu0 %v196
    %v220 = vpop.f32.mrf.mxu0
    %v221 = vadd.f32 %v154, %v220
    %v222 = vpop.f32.mrf.mxu0
    %v223 = vadd.f32 %v158, %v222
    %224 = vmatmul.bf16.gmra.mxu0 %v199
    %v225 = vpop.f32.mrf.mxu0
    %v226 = vadd.f32 %v162, %v225
    %v227 = vpop.f32.mrf.mxu0
    %v228 = vadd.f32 %v166, %v227
    %229 = vdwg.mxu0
    %v230 = vtanh.pop %v211
    %v231 = vtanh.pop %v213
    %v232 = vtanh.pop %v216
    %v233 = vtanh.pop %v218
    %v234 = vtanh.pop %v221
    %v235 = vtanh.pop %v223
    %v236 = vtanh.pop %v226
    %v237 = vtanh.pop %v228
    %s238 = scalar_lea.vmem %s1, 32
    %v239 = vld [vmem:[%s238] sm:$0xf]
    %v240 = vld [vmem:[%s238 + $0x4] sm:$0xf]
    %v241 = vld [vmem:[%s238 + $0x8] sm:$0xf]
    %v242 = vld [vmem:[%s238 + $0xc] sm:$0xf]
    %v243 = vld [vmem:[%s238 + $0x10] sm:$0xf]
    %v244 = vld [vmem:[%s238 + $0x14] sm:$0xf]
    %v245 = vld [vmem:[%s238 + $0x18] sm:$0xf]
    %v246 = vld [vmem:[%s238 + $0x1c] sm:$0xf]
    %v247 = vpack.c.bf16 %v231, %v230
    %v248 = vpack.c.bf16 %v233, %v232
    %v249 = vpack.c.bf16 %v235, %v234
    %v250 = vpack.c.bf16 %v237, %v236
    %251 = vset.pattern.permute.xlu0 3
    %252 = vperm.xlu0 %251, %v17
    %v253 = vpop.permute.xlu0 %252
    %255 = vset.pattern.permute.xlu0 3
    %256 = vperm.xlu0 %255, %v18
    %v257 = vpop.permute.xlu0 %256
    %259 = vset.pattern.permute.xlu0 3
    %260 = vperm.xlu0 %259, %v19
    %v261 = vpop.permute.xlu0 %260
    %263 = vset.pattern.permute.xlu0 3
    %264 = vperm.xlu0 %263, %v20
    %v265 = vpop.permute.xlu0 %264
    %267 = vset.pattern.permute.xlu0 3
    %268 = vperm.xlu0 %267, %v21
    %v269 = vpop.permute.xlu0 %268
    %271 = vset.pattern.permute.xlu0 3
    %272 = vperm.xlu0 %271, %v22
    %v273 = vpop.permute.xlu0 %272
    %275 = vset.pattern.permute.xlu0 3
    %276 = vperm.xlu0 %275, %v23
    %v277 = vpop.permute.xlu0 %276
    %279 = vset.pattern.permute.xlu0 3
    %280 = vperm.xlu0 %279, %v24
    %v281 = vpop.permute.xlu0 %280
    %v291 = vunpack.c.l.b16 %v239
    %v292 = vunpack.c.l.b16 %v240
    %v293 = vunpack.c.l.b16 %v241
    %v294 = vunpack.c.l.b16 %v242
    %v295 = vunpack.c.l.b16 %v243
    %v296 = vunpack.c.l.b16 %v244
    %v297 = vunpack.c.l.b16 %v245
    %v298 = vunpack.c.l.b16 %v246
    %v299 = vpack.c.b16 %v292, %v291
    %v300 = vpack.c.b16 %v294, %v293
    %v301 = vpack.c.b16 %v296, %v295
    %v302 = vpack.c.b16 %v298, %v297
    %v304 = vsel %vm188, %v299, 0
    %v307 = vsel %vm188, %v300, 0
    %v310 = vsel %vm188, %v301, 0
    %v313 = vsel %vm188, %v302, 0
    %315 = vmatpush.bf16.msra.mxu0 0
    %316 = vmatpush.bf16.msra.mxu0 0
    %317 = vmatpush.bf16.msra.mxu0 0
    %318 = vmatpush.bf16.msra.mxu0 0
    %319 = vmatpush.bf16.msra.mxu0 %v250
    %320 = vmatpush.bf16.msra.mxu0 %v249
    %321 = vmatpush.bf16.msra.mxu0 %v248
    %322 = vmatpush.bf16.msra.mxu0 %v247
    %323 = vmatmul.bf16.gmra.mxu0 %v304
    %v324 = vpop.f32.mrf.mxu0
    %v325 = vadd.f32 %v253, %v324
    %v326 = vpop.f32.mrf.mxu0
    %v327 = vadd.f32 %v257, %v326
    %328 = vmatmul.bf16.gmra.mxu0 %v307
    %v329 = vpop.f32.mrf.mxu0
    %v330 = vadd.f32 %v261, %v329
    %v331 = vpop.f32.mrf.mxu0
    %v332 = vadd.f32 %v265, %v331
    %333 = vmatmul.bf16.gmra.mxu0 %v310
    %v334 = vpop.f32.mrf.mxu0
    %v335 = vadd.f32 %v269, %v334
    %v336 = vpop.f32.mrf.mxu0
    %v337 = vadd.f32 %v273, %v336
    %338 = vmatmul.bf16.gmra.mxu0 %v313
    %v339 = vpop.f32.mrf.mxu0
    %v340 = vadd.f32 %v277, %v339
    %v341 = vpop.f32.mrf.mxu0
    %v342 = vadd.f32 %v281, %v341
    %343 = vdwg.mxu0
    %v344 = vmul.f32 %v325, 0.5
    %v345 = vmul.f32 %v327, 0.5
    %v346 = vmul.f32 %v330, 0.5
    %v347 = vmul.f32 %v332, 0.5
    %v348 = vmul.f32 %v335, 0.5
    %v349 = vmul.f32 %v337, 0.5
    %v350 = vmul.f32 %v340, 0.5
    %v351 = vmul.f32 %v342, 0.5
    %v352 = vtanh.pop %v344
    %v353 = vtanh.pop %v345
    %v354 = vtanh.pop %v346
    %v355 = vtanh.pop %v347
    %v356 = vtanh.pop %v348
    %v357 = vtanh.pop %v349
    %v358 = vtanh.pop %v350
    %v359 = vtanh.pop %v351
    %v360 = vmul.f32 %v352, 0.5
    %v361 = vmul.f32 %v353, 0.5
    %v362 = vmul.f32 %v354, 0.5
    %v363 = vmul.f32 %v355, 0.5
    %v364 = vmul.f32 %v356, 0.5
    %v365 = vmul.f32 %v357, 0.5
    %v366 = vmul.f32 %v358, 0.5
    %v367 = vmul.f32 %v359, 0.5
    %v368 = vadd.f32 %v360, 0.5
    %v369 = vadd.f32 %v361, 0.5
    %v370 = vadd.f32 %v362, 0.5
    %v371 = vadd.f32 %v363, 0.5
    %v372 = vadd.f32 %v364, 0.5
    %v373 = vadd.f32 %v365, 0.5
    %v374 = vadd.f32 %v366, 0.5
    %v375 = vadd.f32 %v367, 0.5
    %v376 = vld [vmem:[%s2] sm:$0x1]
    %377 = vset.pattern.permute.xlu0 4
    %378 = vperm.xlu0 %377, %v17
    %v379 = vpop.permute.xlu0 %378
    %381 = vset.pattern.permute.xlu0 4
    %382 = vperm.xlu0 %381, %v18
    %v383 = vpop.permute.xlu0 %382
    %385 = vset.pattern.permute.xlu0 4
    %386 = vperm.xlu0 %385, %v19
    %v387 = vpop.permute.xlu0 %386
    %389 = vset.pattern.permute.xlu0 4
    %390 = vperm.xlu0 %389, %v20
    %v391 = vpop.permute.xlu0 %390
    %393 = vset.pattern.permute.xlu0 4
    %394 = vperm.xlu0 %393, %v21
    %v395 = vpop.permute.xlu0 %394
    %397 = vset.pattern.permute.xlu0 4
    %398 = vperm.xlu0 %397, %v22
    %v399 = vpop.permute.xlu0 %398
    %401 = vset.pattern.permute.xlu0 4
    %402 = vperm.xlu0 %401, %v23
    %v403 = vpop.permute.xlu0 %402
    %405 = vset.pattern.permute.xlu0 4
    %406 = vperm.xlu0 %405, %v24
    %v407 = vpop.permute.xlu0 %406
    %v409 = vmul.f32 %v379, %v368
    %v410 = vmul.f32 %v383, %v369
    %v411 = vmul.f32 %v387, %v370
    %v412 = vmul.f32 %v391, %v371
    %v413 = vmul.f32 %v395, %v372
    %v414 = vmul.f32 %v399, %v373
    %v415 = vmul.f32 %v403, %v374
    %v416 = vmul.f32 %v407, %v375
    %v417 = vadd.f32 %v409, %v410
    %v418 = vadd.f32 %v417, %v411
    %v419 = vadd.f32 %v418, %v412
    %v420 = vadd.f32 %v419, %v413
    %v421 = vadd.f32 %v420, %v414
    %v422 = vadd.f32 %v421, %v415
    %v423 = vadd.f32 %v422, %v416
    %v424 = vrot.slane %v423, 4
    %v425 = vadd.f32 %v423, %v424
    %v426 = vrot.slane %v425, 2
    %v427 = vadd.f32 %v425, %v426
    %v428 = vrot.slane %v427, 1
    %v429 = vadd.f32 %v427, %v428
    %431 = vset.pattern.permute.xlu0 5
    %432 = vperm.xlu0 %431, %v376
    %v433 = vpop.permute.xlu0 %432
    %v435 = vadd.f32 %v429, %v433
    %436 = vst [vmem:[#allocation2] sm:$0x1] %v435
    // Predicated region
    $region14: #{tpu_custom_call.1} parent=1 // pred_check
      _
    $region15: #{tpu_custom_call.1} parent=1 // pred_check_branch
      %438 = sbr.rel (0) target = $region17
    $region16: #{tpu_custom_call.1} parent=1 // pred_region
      %440 = vsyncadd [#allocation3], 0
      %s442 = sshll.u32 [#allocation2], 4
      %s443 = int_to_ptr.vmem [resolvable:$true] %s442
      %s444 = sshll.u32 %s3, 4
      %s445 = int_to_ptr.hbm [resolvable:$true] %s444
      %447 = dma.vmem_to_hbm [thread:$0]  %s443, 16, %s445, [#allocation3]
    $region17: #{tpu_custom_call.1} parent=1 // pred_fallthru
      _
    // Predicated region
    $region18: #{tpu_custom_call.1} parent=1 // pred_check
      _
    $region19: #{tpu_custom_call.1} parent=1 // pred_check_branch
      %449 = sbr.rel (0) target = $region21
    $region20: #{tpu_custom_call.1} parent=1 // pred_region
      %451 = dma.done [#allocation3], 16
    $region21: #{tpu_custom_call.1} parent=1 // pred_fallthru
      _
    %452 = vsyncpa [#allocation3], 1

</llo_original>
